<compile_context>
chip_gen: v6e
topology: v6e:2x2x1
jax: 0.10.0
libtpu: 0.0.40
codegen_flags: <defaults>
</compile_context>

<pallas_src>
import functools

import jax
import jax.numpy as jnp
from jax.experimental import pallas as pl
from jax.experimental.pallas import tpu as pltpu

LANE = 128  # TPU lane width; padded feature dims live on 128 lanes.


# ---------------------------------------------------------------------------
# Architecture bookkeeping (mirrors the PyTorch __init__ arithmetic exactly,
# including python int() truncation).
# ---------------------------------------------------------------------------
def generator_dims(input_size=72, num_hidden_layers=2, latent_dim=100):
    enc = []
    for i in range(num_hidden_layers):
        in_f = int(input_size - (input_size - latent_dim) * i / num_hidden_layers)
        out_f = int(input_size - (input_size - latent_dim) * (i + 1) / num_hidden_layers)
        enc.append((in_f, out_f))
    dec = []
    for i in reversed(range(num_hidden_layers + 1)):
        in_f = int(input_size - (input_size - latent_dim) * (i + 1) / (num_hidden_layers + 1))
        out_f = int(input_size - (input_size - latent_dim) * i / (num_hidden_layers + 1))
        dec.append((in_f, out_f))
    return enc, dec


# ---------------------------------------------------------------------------
# Deterministic parameter init (PyTorch nn.Linear default: U(-1/sqrt(in), +)).
# Weights stored as (in_features, out_features); biases as (1, out_features).
# ---------------------------------------------------------------------------
def init_linear(key, in_f, out_f):
    kw, kb = jax.random.split(key)
    bound = 1.0 / (in_f ** 0.5)
    w = jax.random.uniform(kw, (in_f, out_f), jnp.float32, -bound, bound)
    b = jax.random.uniform(kb, (1, out_f), jnp.float32, -bound, bound)
    return w, b


def init_generator_params(key, input_size=72, num_hidden_layers=2, latent_dim=100):
    enc_dims, dec_dims = generator_dims(input_size, num_hidden_layers, latent_dim)
    n_layers = len(enc_dims) + 2 + len(dec_dims)
    keys = jax.random.split(key, n_layers)
    params = []
    k = 0
    for (i, o) in enc_dims:
        params.extend(init_linear(keys[k], i, o)); k += 1
    params.extend(init_linear(keys[k], latent_dim, latent_dim)); k += 1  # mean_layer
    params.extend(init_linear(keys[k], latent_dim, latent_dim)); k += 1  # var_layer
    for (i, o) in dec_dims:
        params.extend(init_linear(keys[k], i, o)); k += 1
    return params, enc_dims, dec_dims


# ---------------------------------------------------------------------------
# Parameter packing: zero-pad to 128 lanes and pack into 4 arrays total.
# Zero padding is numerically safe: padded weight rows/cols and biases are 0,
# so padded lanes never contaminate real lanes and the row-sum is unchanged.
# ---------------------------------------------------------------------------
def _pad_to(x, shape):
    out = jnp.zeros(shape, x.dtype)
    return out.at[tuple(slice(0, s) for s in x.shape)].set(x)


def pack_generator_params(params, n_enc, n_dec):
    """params is the flat [w, b, w, b, ...] list in encoder, mu, var, decoder order."""
    ws, bs = params[0::2], params[1::2]
    enc_ws, enc_bs = ws[:n_enc], bs[:n_enc]
    mu_w, mu_b = ws[n_enc], bs[n_enc]
    var_w, var_b = ws[n_enc + 1], bs[n_enc + 1]
    dec_ws, dec_bs = ws[n_enc + 2:], bs[n_enc + 2:]

    w_slab = jnp.stack([_pad_to(w, (LANE, LANE)) for w in enc_ws + dec_ws])   # (L,128,128)
    b_slab = jnp.stack([_pad_to(b, (1, LANE)) for b in enc_bs + dec_bs])      # (L,1,128)
    w_head = jnp.concatenate([_pad_to(mu_w, (LANE, LANE)),
                              _pad_to(var_w, (LANE, LANE))], axis=1)          # (128,256)
    b_head = jnp.concatenate([_pad_to(mu_b, (1, LANE)),
                              _pad_to(var_b, (1, LANE))], axis=1)             # (1,256)
    return w_slab, b_slab, w_head, b_head


# ---------------------------------------------------------------------------
# Pallas kernel: one batch tile per grid step; weights stay VMEM-resident.
# Fused output layout per row: [ decode(128) | z_mu(128) | z_var(128) ].
# ---------------------------------------------------------------------------
def _make_kernel(n_enc, n_dec, use_noise, input_size):
    def body(x_ref, noise_ref, w_slab_ref, b_slab_ref, w_head_ref, b_head_ref,
             out_ref):

        def leaky(h):  # LeakyReLU(0.1): max(h, 0.1h) == where(h>0, h, 0.1h)
            return jnp.maximum(h, 0.1 * h)

        x = x_ref[...]                                    # (TB, input_size)

        # --- encoder layer 0: contract over the real input width (K=72) ---
        w0 = w_slab_ref[0][:input_size, :]                # sublane-aligned slice
        h = leaky(jnp.dot(x, w0, preferred_element_type=jnp.float32)
                  + b_slab_ref[0])
        for i in range(1, n_enc):
            h = leaky(jnp.dot(h, w_slab_ref[i],
                              preferred_element_type=jnp.float32) + b_slab_ref[i])

        # --- fused mu / var heads: one (128,256) matmul, split columns ---
        head = (jnp.dot(h, w_head_ref[...], preferred_element_type=jnp.float32)
                + b_head_ref[...])                        # (TB, 256)
        z_mu = head[:, :LANE]
        z_var = jnp.exp(head[:, LANE:])

        # --- reparameterize (noise lanes >= latent_dim hit zero weight rows) ---
        if use_noise:
            z = z_mu + z_var * noise_ref[...]
        else:
            z = z_mu

        # --- decoder ---
        d = z
        for j in range(n_dec):
            d = (jnp.dot(d, w_slab_ref[n_enc + j],
                         preferred_element_type=jnp.float32) + b_slab_ref[n_enc + j])
            d = leaky(d) if j < n_dec - 1 else jnp.maximum(d, 0.0)  # ReLU on last

        # --- row-normalize: x / x.sum(dim=1, keepdim) (EUP recip + 1 Newton) ---
        s = jnp.sum(d, axis=1, keepdims=True)
        r = pl.reciprocal(s, approx=True)
        r = r * (2.0 - s * r)

        out_ref[:, :LANE] = d * r
        out_ref[:, LANE:2 * LANE] = z_mu
        out_ref[:, 2 * LANE:] = z_var

    if use_noise:
        def kernel(x_ref, noise_ref, w_slab_ref, b_slab_ref, w_head_ref,
                   b_head_ref, out_ref):
            body(x_ref, noise_ref, w_slab_ref, b_slab_ref, w_head_ref,
                 b_head_ref, out_ref)
    else:
        def kernel(x_ref, w_slab_ref, b_slab_ref, w_head_ref, b_head_ref,
                   out_ref):
            body(x_ref, None, w_slab_ref, b_slab_ref, w_head_ref,
                 b_head_ref, out_ref)
    return kernel


def _round_up(n, m):
    return ((n + m - 1) // m) * m


def _pick_batch_tile(batch):
    """Row-tile heuristic: tiny batches get one 8-row-aligned tile; larger
    batches get an EVEN number of grid steps (both v7x TensorCores busy),
    with the tile capped at 1024 rows (well inside VMEM on v5e/v6e/v7x)."""
    cap = 1024
    if batch <= 64:
        return _round_up(batch, 8)
    steps = 2
    while True:
        tb = _round_up(-(-batch // steps), 8)
        if tb <= cap:
            return tb
        steps += 2


@functools.partial(jax.jit, static_argnames=("n_enc", "n_dec", "use_noise",
                                             "input_size", "latent_dim"))
def generator_forward(x, noise, w_slab, b_slab, w_head, b_head, *,
                      n_enc, n_dec, use_noise, input_size, latent_dim):
    """x: (batch, input_size) f32.  noise: (batch, >=latent_dim) f32 or None.
    If noise has 128 columns the extra lanes are ignored (zero weight rows),
    avoiding any lane-pad HBM round trip."""
    batch = x.shape[0]
    tb = _pick_batch_tile(batch)
    grid = (pl.cdiv(batch, tb),)

    kernel = _make_kernel(n_enc, n_dec, use_noise, input_size)

    x_spec = pl.BlockSpec((tb, input_size), lambda i: (i, 0))
    out_spec = pl.BlockSpec((tb, 3 * LANE), lambda i: (i, 0))

    def full_spec(shape):
        n = len(shape)
        return pl.BlockSpec(shape, lambda i, _n=n: (0,) * _n)

    in_specs = [x_spec]
    args = [x.astype(jnp.float32)]
    if use_noise:
        if noise.shape[1] != LANE:  # fallback: pad lanes (costs one HBM copy)
            noise = jnp.pad(noise.astype(jnp.float32),
                            ((0, 0), (0, LANE - noise.shape[1])))
        in_specs.append(pl.BlockSpec((tb, LANE), lambda i: (i, 0)))
        args.append(noise.astype(jnp.float32))
    in_specs += [full_spec(w_slab.shape), full_spec(b_slab.shape),
                 full_spec(w_head.shape), full_spec(b_head.shape)]
    args += [w_slab, b_slab, w_head, b_head]

    slab = pl.pallas_call(
        kernel,
        out_shape=jax.ShapeDtypeStruct((batch, 3 * LANE), jnp.float32),
        grid=grid,
        in_specs=in_specs,
        out_specs=out_spec,
        compiler_params=pltpu.CompilerParams(
            dimension_semantics=("parallel",),
            vmem_limit_bytes=32 * 1024 * 1024),
    )(*args)

    return (slab[:, :input_size],
            slab[:, LANE:LANE + latent_dim],
            slab[:, 2 * LANE:2 * LANE + latent_dim])


# ---------------------------------------------------------------------------
# Pure-JAX reference (uses the original, unpadded parameters).
# ---------------------------------------------------------------------------
def reference_forward(x, noise, params, n_enc, n_dec, use_noise):
    p = list(params)
    idx = 0
    h = x
    for _ in range(n_enc):
        h = jnp.dot(h, p[idx]) + p[idx + 1]
        h = jnp.where(h > 0, h, 0.1 * h)
        idx += 2
    z_mu = jnp.dot(h, p[idx]) + p[idx + 1]; idx += 2
    z_var = jnp.exp(jnp.dot(h, p[idx]) + p[idx + 1]); idx += 2
    z = z_mu + z_var * noise if use_noise else z_mu
    d = z
    for j in range(n_dec):
        d = jnp.dot(d, p[idx]) + p[idx + 1]; idx += 2
        if j < n_dec - 1:
            d = jnp.where(d > 0, d, 0.1 * d)
        else:
            d = jnp.maximum(d, 0.0)
    d = d / jnp.sum(d, axis=1, keepdims=True)
    return d, z_mu, z_var


if __name__ == "__main__":
    INPUT_SIZE = 72
    NUM_HIDDEN = 2
    LATENT_DIM = 100
    BATCH = 2

    key = jax.random.PRNGKey(0)
    k_params, k_x, k_noise = jax.random.split(key, 3)

    params, enc_dims, dec_dims = init_generator_params(
        k_params, INPUT_SIZE, NUM_HIDDEN, LATENT_DIM)
    n_enc, n_dec = len(enc_dims), len(dec_dims)

    # Pack / pad weights once (would be cached in a real training loop).
    w_slab, b_slab, w_head, b_head = pack_generator_params(params, n_enc, n_dec)

    x = jax.random.normal(k_x, (BATCH, INPUT_SIZE), jnp.float32)
    # Deterministic reparameterization noise (stands in for torch.randn).
    # Generated 128 lanes wide so the kernel consumes it directly; only the
    # first LATENT_DIM columns are semantically used.
    noise = jax.random.normal(k_noise, (BATCH, LANE), jnp.float32)
    noise_narrow = noise[:, :LATENT_DIM]

    out, z_mu, z_var = generator_forward(
        x, noise, w_slab, b_slab, w_head, b_head,
        n_enc=n_enc, n_dec=n_dec, use_noise=True,
        input_size=INPUT_SIZE, latent_dim=LATENT_DIM)
    jax.block_until_ready((out, z_mu, z_var))

    ref_out, ref_mu, ref_var = reference_forward(x, noise_narrow, params,
                                                 n_enc, n_dec, True)
    assert out.shape == (BATCH, INPUT_SIZE)
    assert z_mu.shape == (BATCH, LATENT_DIM) and z_var.shape == (BATCH, LATENT_DIM)
    assert jnp.allclose(out, ref_out, atol=1e-4, rtol=1e-4)
    assert jnp.allclose(z_mu, ref_mu, atol=1e-4, rtol=1e-4)
    assert jnp.allclose(z_var, ref_var, atol=1e-4, rtol=1e-4)
    # Rows of the decoded output sum to 1 (post ReLU + normalization).
    assert jnp.allclose(jnp.sum(out, axis=1), jnp.ones((BATCH,)), atol=1e-4)

    # noise=False path: no noise input / DMA at all.
    out2, mu2, var2 = generator_forward(
        x, None, w_slab, b_slab, w_head, b_head,
        n_enc=n_enc, n_dec=n_dec, use_noise=False,
        input_size=INPUT_SIZE, latent_dim=LATENT_DIM)
    ref2 = reference_forward(x, noise_narrow, params, n_enc, n_dec, False)
    jax.block_until_ready((out2, mu2, var2))
    assert jnp.allclose(out2, ref2[0], atol=1e-4, rtol=1e-4)
    assert jnp.allclose(mu2, ref2[1], atol=1e-4, rtol=1e-4)

    # Larger, ragged batch exercising an even 2-step grid (both v7x TCs).
    NB = 1027
    xb = jax.random.normal(jax.random.PRNGKey(7), (NB, INPUT_SIZE), jnp.float32)
    nb = jax.random.normal(jax.random.PRNGKey(8), (NB, LANE), jnp.float32)
    outb, mub, varb = generator_forward(
        xb, nb, w_slab, b_slab, w_head, b_head,
        n_enc=n_enc, n_dec=n_dec, use_noise=True,
        input_size=INPUT_SIZE, latent_dim=LATENT_DIM)
    refb = reference_forward(xb, nb[:, :LATENT_DIM], params, n_enc, n_dec, True)
    jax.block_until_ready((outb, mub, varb))
    assert jnp.allclose(outb, refb[0], atol=1e-4, rtol=1e-4)
    assert jnp.allclose(mub, refb[1], atol=1e-4, rtol=1e-4)
    assert jnp.allclose(varb, refb[2], atol=1e-4, rtol=1e-4)

    print("KERNEL_OK")
</pallas_src>

<mosaic_0001>
module attributes {stable_mosaic.version = 11 : i64} {
  func.func @kernel(%arg0: i32, %arg1: memref<8x72xf32, #tpu.memory_space<vmem>>, %arg2: memref<8x128xf32, #tpu.memory_space<vmem>>, %arg3: memref<5x128x128xf32, #tpu.memory_space<vmem>>, %arg4: memref<5x1x128xf32, #tpu.memory_space<vmem>>, %arg5: memref<128x256xf32, #tpu.memory_space<vmem>>, %arg6: memref<1x256xf32, #tpu.memory_space<vmem>>, %arg7: memref<8x384xf32, #tpu.memory_space<vmem>>) attributes {dimension_semantics = [#tpu.dimension_semantics<parallel>], iteration_bounds = array<i64: 1>, scalar_prefetch = 0 : i64, scratch_operands = 0 : i64, tpu.core_type = #tpu.core_type<tc>, window_params = [{transform_indices = @transform_0, window_bounds = array<i64: 8, 72>}, {transform_indices = @transform_1, window_bounds = array<i64: 8, 128>}, {pipeline_mode = #tpu.pipeline_mode<synchronous>, transform_indices = @transform_2, window_bounds = array<i64: 5, 128, 128>}, {pipeline_mode = #tpu.pipeline_mode<synchronous>, transform_indices = @transform_3, window_bounds = array<i64: 5, 1, 128>}, {pipeline_mode = #tpu.pipeline_mode<synchronous>, transform_indices = @transform_4, window_bounds = array<i64: 128, 256>}, {pipeline_mode = #tpu.pipeline_mode<synchronous>, transform_indices = @transform_5, window_bounds = array<i64: 1, 256>}, {transform_indices = @transform_6, window_bounds = array<i64: 8, 384>}]} {
    %c0 = arith.constant 0 : index
    %c0_0 = arith.constant 0 : index
    %0 = vector.load %arg1[%c0, %c0_0] : memref<8x72xf32, #tpu.memory_space<vmem>>, vector<8x72xf32>
    %c0_1 = arith.constant 0 : index
    %c0_2 = arith.constant 0 : index
    %c0_3 = arith.constant 0 : index
    %1 = vector.load %arg3[%c0_1, %c0_2, %c0_3] : memref<5x128x128xf32, #tpu.memory_space<vmem>>, vector<1x128x128xf32>
    %2 = vector.shape_cast %1 : vector<1x128x128xf32> to vector<128x128xf32>
    %3 = vector.extract_strided_slice %2 {offsets = [0, 0], sizes = [72, 128], strides = [1, 1]} : vector<128x128xf32> to vector<72x128xf32>
    %cst = arith.constant dense<0.000000e+00> : vector<8x128xf32>
    %4 = tpu.matmul %0, %3, %cst {dimension_numbers = #tpu.dot_dimension_numbers<[1], [0], [0], [1], [0, 0, 1, 1], [], []>} : vector<8x72xf32>, vector<72x128xf32>, vector<8x128xf32> -> vector<8x128xf32>
    %c0_4 = arith.constant 0 : index
    %c0_5 = arith.constant 0 : index
    %c0_6 = arith.constant 0 : index
    %5 = vector.load %arg4[%c0_4, %c0_5, %c0_6] : memref<5x1x128xf32, #tpu.memory_space<vmem>>, vector<1x1x128xf32>
    %6 = vector.shape_cast %5 : vector<1x1x128xf32> to vector<1x128xf32>
    %7 = vector.broadcast %6 : vector<1x128xf32> to vector<8x128xf32>
    %8 = arith.addf %4, %7 : vector<8x128xf32>
    %cst_7 = arith.constant 1.000000e-01 : f32
    %9 = vector.broadcast %cst_7 : f32 to vector<8x128xf32>
    %10 = arith.mulf %9, %8 : vector<8x128xf32>
    %11 = arith.maximumf %8, %10 : vector<8x128xf32>
    %c1 = arith.constant 1 : index
    %c0_8 = arith.constant 0 : index
    %c0_9 = arith.constant 0 : index
    %12 = vector.load %arg3[%c1, %c0_8, %c0_9] : memref<5x128x128xf32, #tpu.memory_space<vmem>>, vector<1x128x128xf32>
    %13 = vector.shape_cast %12 : vector<1x128x128xf32> to vector<128x128xf32>
    %cst_10 = arith.constant dense<0.000000e+00> : vector<8x128xf32>
    %14 = tpu.matmul %11, %13, %cst_10 {dimension_numbers = #tpu.dot_dimension_numbers<[1], [0], [0], [1], [0, 0, 1, 1], [], []>} : vector<8x128xf32>, vector<128x128xf32>, vector<8x128xf32> -> vector<8x128xf32>
    %c1_11 = arith.constant 1 : index
    %c0_12 = arith.constant 0 : index
    %c0_13 = arith.constant 0 : index
    %15 = vector.load %arg4[%c1_11, %c0_12, %c0_13] : memref<5x1x128xf32, #tpu.memory_space<vmem>>, vector<1x1x128xf32>
    %16 = vector.shape_cast %15 : vector<1x1x128xf32> to vector<1x128xf32>
    %17 = vector.broadcast %16 : vector<1x128xf32> to vector<8x128xf32>
    %18 = arith.addf %14, %17 : vector<8x128xf32>
    %cst_14 = arith.constant 1.000000e-01 : f32
    %19 = vector.broadcast %cst_14 : f32 to vector<8x128xf32>
    %20 = arith.mulf %19, %18 : vector<8x128xf32>
    %21 = arith.maximumf %18, %20 : vector<8x128xf32>
    %c0_15 = arith.constant 0 : index
    %c0_16 = arith.constant 0 : index
    %22 = vector.load %arg5[%c0_15, %c0_16] : memref<128x256xf32, #tpu.memory_space<vmem>>, vector<128x256xf32>
    %cst_17 = arith.constant dense<0.000000e+00> : vector<8x256xf32>
    %23 = tpu.matmul %21, %22, %cst_17 {dimension_numbers = #tpu.dot_dimension_numbers<[1], [0], [0], [1], [0, 0, 1, 1], [], []>} : vector<8x128xf32>, vector<128x256xf32>, vector<8x256xf32> -> vector<8x256xf32>
    %c0_18 = arith.constant 0 : index
    %c0_19 = arith.constant 0 : index
    %24 = vector.load %arg6[%c0_18, %c0_19] : memref<1x256xf32, #tpu.memory_space<vmem>>, vector<1x256xf32>
    %25 = vector.broadcast %24 : vector<1x256xf32> to vector<8x256xf32>
    %26 = arith.addf %23, %25 : vector<8x256xf32>
    %27 = vector.extract_strided_slice %26 {offsets = [0, 0], sizes = [8, 128], strides = [1, 1]} : vector<8x256xf32> to vector<8x128xf32>
    %28 = vector.extract_strided_slice %26 {offsets = [0, 128], sizes = [8, 128], strides = [1, 1]} : vector<8x256xf32> to vector<8x128xf32>
    %29 = math.exp %28 : vector<8x128xf32>
    %c0_20 = arith.constant 0 : index
    %c0_21 = arith.constant 0 : index
    %30 = vector.load %arg2[%c0_20, %c0_21] : memref<8x128xf32, #tpu.memory_space<vmem>>, vector<8x128xf32>
    %31 = arith.mulf %29, %30 : vector<8x128xf32>
    %32 = arith.addf %27, %31 : vector<8x128xf32>
    %c2 = arith.constant 2 : index
    %c0_22 = arith.constant 0 : index
    %c0_23 = arith.constant 0 : index
    %33 = vector.load %arg3[%c2, %c0_22, %c0_23] : memref<5x128x128xf32, #tpu.memory_space<vmem>>, vector<1x128x128xf32>
    %34 = vector.shape_cast %33 : vector<1x128x128xf32> to vector<128x128xf32>
    %cst_24 = arith.constant dense<0.000000e+00> : vector<8x128xf32>
    %35 = tpu.matmul %32, %34, %cst_24 {dimension_numbers = #tpu.dot_dimension_numbers<[1], [0], [0], [1], [0, 0, 1, 1], [], []>} : vector<8x128xf32>, vector<128x128xf32>, vector<8x128xf32> -> vector<8x128xf32>
    %c2_25 = arith.constant 2 : index
    %c0_26 = arith.constant 0 : index
    %c0_27 = arith.constant 0 : index
    %36 = vector.load %arg4[%c2_25, %c0_26, %c0_27] : memref<5x1x128xf32, #tpu.memory_space<vmem>>, vector<1x1x128xf32>
    %37 = vector.shape_cast %36 : vector<1x1x128xf32> to vector<1x128xf32>
    %38 = vector.broadcast %37 : vector<1x128xf32> to vector<8x128xf32>
    %39 = arith.addf %35, %38 : vector<8x128xf32>
    %cst_28 = arith.constant 1.000000e-01 : f32
    %40 = vector.broadcast %cst_28 : f32 to vector<8x128xf32>
    %41 = arith.mulf %40, %39 : vector<8x128xf32>
    %42 = arith.maximumf %39, %41 : vector<8x128xf32>
    %c3 = arith.constant 3 : index
    %c0_29 = arith.constant 0 : index
    %c0_30 = arith.constant 0 : index
    %43 = vector.load %arg3[%c3, %c0_29, %c0_30] : memref<5x128x128xf32, #tpu.memory_space<vmem>>, vector<1x128x128xf32>
    %44 = vector.shape_cast %43 : vector<1x128x128xf32> to vector<128x128xf32>
    %cst_31 = arith.constant dense<0.000000e+00> : vector<8x128xf32>
    %45 = tpu.matmul %42, %44, %cst_31 {dimension_numbers = #tpu.dot_dimension_numbers<[1], [0], [0], [1], [0, 0, 1, 1], [], []>} : vector<8x128xf32>, vector<128x128xf32>, vector<8x128xf32> -> vector<8x128xf32>
    %c3_32 = arith.constant 3 : index
    %c0_33 = arith.constant 0 : index
    %c0_34 = arith.constant 0 : index
    %46 = vector.load %arg4[%c3_32, %c0_33, %c0_34] : memref<5x1x128xf32, #tpu.memory_space<vmem>>, vector<1x1x128xf32>
    %47 = vector.shape_cast %46 : vector<1x1x128xf32> to vector<1x128xf32>
    %48 = vector.broadcast %47 : vector<1x128xf32> to vector<8x128xf32>
    %49 = arith.addf %45, %48 : vector<8x128xf32>
    %cst_35 = arith.constant 1.000000e-01 : f32
    %50 = vector.broadcast %cst_35 : f32 to vector<8x128xf32>
    %51 = arith.mulf %50, %49 : vector<8x128xf32>
    %52 = arith.maximumf %49, %51 : vector<8x128xf32>
    %c4 = arith.constant 4 : index
    %c0_36 = arith.constant 0 : index
    %c0_37 = arith.constant 0 : index
    %53 = vector.load %arg3[%c4, %c0_36, %c0_37] : memref<5x128x128xf32, #tpu.memory_space<vmem>>, vector<1x128x128xf32>
    %54 = vector.shape_cast %53 : vector<1x128x128xf32> to vector<128x128xf32>
    %cst_38 = arith.constant dense<0.000000e+00> : vector<8x128xf32>
    %55 = tpu.matmul %52, %54, %cst_38 {dimension_numbers = #tpu.dot_dimension_numbers<[1], [0], [0], [1], [0, 0, 1, 1], [], []>} : vector<8x128xf32>, vector<128x128xf32>, vector<8x128xf32> -> vector<8x128xf32>
    %c4_39 = arith.constant 4 : index
    %c0_40 = arith.constant 0 : index
    %c0_41 = arith.constant 0 : index
    %56 = vector.load %arg4[%c4_39, %c0_40, %c0_41] : memref<5x1x128xf32, #tpu.memory_space<vmem>>, vector<1x1x128xf32>
    %57 = vector.shape_cast %56 : vector<1x1x128xf32> to vector<1x128xf32>
    %58 = vector.broadcast %57 : vector<1x128xf32> to vector<8x128xf32>
    %59 = arith.addf %55, %58 : vector<8x128xf32>
    %cst_42 = arith.constant 0.000000e+00 : f32
    %60 = vector.broadcast %cst_42 : f32 to vector<8x128xf32>
    %61 = arith.maximumf %59, %60 : vector<8x128xf32>
    %cst_43 = arith.constant dense<0.000000e+00> : vector<8xf32>
    %62 = vector.multi_reduction <add>, %61, %cst_43 [1] : vector<8x128xf32> to vector<8xf32>
    %63 = vector.shape_cast %62 : vector<8xf32> to vector<8x1xf32>
    %64 = tpu.reciprocal %63 {approx = true} : vector<8x1xf32> -> vector<8x1xf32>
    %65 = arith.mulf %63, %64 : vector<8x1xf32>
    %cst_44 = arith.constant 2.000000e+00 : f32
    %66 = vector.broadcast %cst_44 : f32 to vector<8x1xf32>
    %67 = arith.subf %66, %65 : vector<8x1xf32>
    %68 = arith.mulf %64, %67 : vector<8x1xf32>
    %69 = vector.broadcast %68 : vector<8x1xf32> to vector<8x128xf32>
    %70 = arith.mulf %61, %69 : vector<8x128xf32>
    %c0_45 = arith.constant 0 : index
    %c0_46 = arith.constant 0 : index
    %71 = vector.load %arg7[%c0_45, %c0_46] : memref<8x384xf32, #tpu.memory_space<vmem>>, vector<8x128xf32>
    tpu.vector_store %arg7[%c0_45, %c0_46], %70 {strides = array<i32>} : memref<8x384xf32, #tpu.memory_space<vmem>>, vector<8x128xf32>,
    %c0_47 = arith.constant 0 : index
    %c128 = arith.constant 128 : index
    %72 = vector.load %arg7[%c0_47, %c128] : memref<8x384xf32, #tpu.memory_space<vmem>>, vector<8x128xf32>
    tpu.vector_store %arg7[%c0_47, %c128], %27 {strides = array<i32>} : memref<8x384xf32, #tpu.memory_space<vmem>>, vector<8x128xf32>,
    %c0_48 = arith.constant 0 : index
    %c256 = arith.constant 256 : index
    %73 = vector.load %arg7[%c0_48, %c256] : memref<8x384xf32, #tpu.memory_space<vmem>>, vector<8x128xf32>
    tpu.vector_store %arg7[%c0_48, %c256], %29 {strides = array<i32>} : memref<8x384xf32, #tpu.memory_space<vmem>>, vector<8x128xf32>,
    return
  }
  func.func @transform_0(%arg0: i32) -> (i32, i32) {
    %c0_i32 = arith.constant 0 : i32
    %c0_i32_0 = arith.constant 0 : i32
    return %arg0, %c0_i32 : i32, i32
  }
  func.func @transform_1(%arg0: i32) -> (i32, i32) {
    %c0_i32 = arith.constant 0 : i32
    %c0_i32_0 = arith.constant 0 : i32
    return %arg0, %c0_i32 : i32, i32
  }
  func.func @transform_2(%arg0: i32) -> (i32, i32, i32) {
    %c0_i32 = arith.constant 0 : i32
    %c0_i32_0 = arith.constant 0 : i32
    %c0_i32_1 = arith.constant 0 : i32
    %c0_i32_2 = arith.constant 0 : i32
    return %c0_i32, %c0_i32_0, %c0_i32_1 : i32, i32, i32
  }
  func.func @transform_3(%arg0: i32) -> (i32, i32, i32) {
    %c0_i32 = arith.constant 0 : i32
    %c0_i32_0 = arith.constant 0 : i32
    %c0_i32_1 = arith.constant 0 : i32
    %c0_i32_2 = arith.constant 0 : i32
    return %c0_i32, %c0_i32_0, %c0_i32_1 : i32, i32, i32
  }
  func.func @transform_4(%arg0: i32) -> (i32, i32) {
    %c0_i32 = arith.constant 0 : i32
    %c0_i32_0 = arith.constant 0 : i32
    %c0_i32_1 = arith.constant 0 : i32
    return %c0_i32, %c0_i32_0 : i32, i32
  }
  func.func @transform_5(%arg0: i32) -> (i32, i32) {
    %c0_i32 = arith.constant 0 : i32
    %c0_i32_0 = arith.constant 0 : i32
    %c0_i32_1 = arith.constant 0 : i32
    return %c0_i32, %c0_i32_0 : i32, i32
  }
  func.func @transform_6(%arg0: i32) -> (i32, i32) {
    %c0_i32 = arith.constant 0 : i32
    %c0_i32_0 = arith.constant 0 : i32
    return %arg0, %c0_i32 : i32, i32
  }
}

</mosaic_0001>

<llo_original>
// kernel: generator_forward.1
$region0: #{generator_forward.1}
  #allocation0 [shape = 'u32[]', space=smem, size = 0x4, offset = 0x4, fixed_abs, tag = 'smem constant byte address 0x4 - core index']
  #allocation1 [shape = 'u32[144,128]{1,0:T(1,128)}', space=vmem, size = 0x12000, scoped, tag = 'internal scratch']
  %s0 = inlined_call_operand.hbm [shape: f32[2,72], index: 0, kind: input, shape index: {}]
  %s1 = inlined_call_operand.vmem [shape: f32[2,128], index: 1, kind: input, shape index: {}]
  %s2 = inlined_call_operand.hbm [shape: f32[5,128,128], index: 2, kind: input, shape index: {}]
  %s3 = inlined_call_operand.vmem [shape: f32[5,1,128], index: 3, kind: input, shape index: {}]
  %s4 = inlined_call_operand.hbm [shape: f32[128,256], index: 4, kind: input, shape index: {}]
  %s5 = inlined_call_operand.vmem [shape: f32[1,256], index: 5, kind: input, shape index: {}]
  %s6 = inlined_call_operand.vmem [shape: f32[2,384], index: 6, kind: output, shape index: {}]
  %s7 = sld [smem:[#allocation0]]
  $region76: #{generator_forward.1} parent=0
    _
  %s9 = ssub.s32 1, %s7
  %s10 = scalar_select 0, %s9, %s7
  $region1: #{generator_forward.1} parent=0
    #allocation2 [shape = 'u8[4096]{0}', space=vmem, size = 0x1000, scoped, tag = 'input window, operand 0, single buffered']
    #allocation3 [shape = 's32[1]{0}', space=sflag, size = 0x4, scoped, tag = 'scoped memory for generator_forward.1']
    #allocation4 [shape = 'u8[327680]{0}', space=vmem, size = 0x50000, scoped, tag = 'input window, operand 2, single buffered']
    #allocation5 [shape = 's32[1]{0}', space=sflag, size = 0x4, scoped, tag = 'scoped memory for generator_forward.1']
    #allocation6 [shape = 'u8[131072]{0}', space=vmem, size = 0x20000, scoped, tag = 'input window, operand 4, single buffered']
    #allocation7 [shape = 'u8[12288]{0}', space=vmem, size = 0x3000, scoped, tag = 'output window, operand 0, single buffered']
    %11 = vsyncpa [#allocation3], 0
    %12 = vsyncpa [#allocation5], 0
    // Predicated region
    $region2: #{generator_forward.1} parent=1 // pred_check
      _
    $region3: #{generator_forward.1} parent=1 // pred_check_branch
      %14 = sbr.rel (0) target = $region5
    $region4: #{generator_forward.1} parent=1 // pred_region
      %s16 = ssub.s32 128, 32
      %17 = vsyncadd [#allocation3], %s16
      %s18 = sshll.u32 [#allocation2], 4
      %s19 = int_to_ptr.vmem [resolvable:$true] %s18
      %24 = dma.hbm_to_vmem [thread:$0]  %s0, 32, %s19, [#allocation3], 32, 32, 2
    $region5: #{generator_forward.1} parent=1 // pred_fallthru
      _
    // Predicated region
    $region6: #{generator_forward.1} parent=1 // pred_check
      _
    $region7: #{generator_forward.1} parent=1 // pred_check_branch
      %26 = sbr.rel (0) target = $region9
    $region8: #{generator_forward.1} parent=1 // pred_region
      _
    $region9: #{generator_forward.1} parent=1 // pred_fallthru
      _
    // Predicated region
    $region10: #{generator_forward.1} parent=1 // pred_check
      _
    $region11: #{generator_forward.1} parent=1 // pred_check_branch
      %28 = sbr.rel (0) target = $region13
    $region12: #{generator_forward.1} parent=1 // pred_region
      %s30 = ssub.s32 10240, 10240
      %31 = vsyncadd [#allocation5], %s30
      %s32 = sshll.u32 [#allocation4], 4
      %s33 = int_to_ptr.vmem [resolvable:$true] %s32
      %38 = dma.hbm_to_vmem [thread:$0]  %s2, 10240, %s33, [#allocation5], 128, 128, 8
    $region13: #{generator_forward.1} parent=1 // pred_fallthru
      _
    // Predicated region
    $region14: #{generator_forward.1} parent=1 // pred_check
      _
    $region15: #{generator_forward.1} parent=1 // pred_check_branch
      %40 = sbr.rel (0) target = $region17
    $region16: #{generator_forward.1} parent=1 // pred_region
      _
    $region17: #{generator_forward.1} parent=1 // pred_fallthru
      _
    // Predicated region
    $region18: #{generator_forward.1} parent=1 // pred_check
      _
    $region19: #{generator_forward.1} parent=1 // pred_check_branch
      %42 = sbr.rel (0) target = $region21
    $region20: #{generator_forward.1} parent=1 // pred_region
      %s44 = ssub.s32 4096, 4096
      %45 = vsyncadd [#allocation5], %s44
      %s46 = sshll.u32 [#allocation6], 4
      %s47 = int_to_ptr.vmem [resolvable:$true] %s46
      %52 = dma.hbm_to_vmem [thread:$0]  %s4, 4096, %s47, [#allocation5], 256, 256, 16
    $region21: #{generator_forward.1} parent=1 // pred_fallthru
      _
    // Predicated region
    $region22: #{generator_forward.1} parent=1 // pred_check
      _
    $region23: #{generator_forward.1} parent=1 // pred_check_branch
      %54 = sbr.rel (0) target = $region25
    $region24: #{generator_forward.1} parent=1 // pred_region
      _
    $region25: #{generator_forward.1} parent=1 // pred_fallthru
      _
    // Predicated region
    $region26: #{generator_forward.1} parent=1 // pred_check
      _
    $region27: #{generator_forward.1} parent=1 // pred_check_branch
      %56 = sbr.rel (0) target = $region29
    $region28: #{generator_forward.1} parent=1 // pred_region
      %57 = dma.done [#allocation3], 128
    $region29: #{generator_forward.1} parent=1 // pred_fallthru
      _
    // Predicated region
    $region30: #{generator_forward.1} parent=1 // pred_check
      _
    $region31: #{generator_forward.1} parent=1 // pred_check_branch
      %59 = sbr.rel (0) target = $region33
    $region32: #{generator_forward.1} parent=1 // pred_region
      %60 = dma.done [#allocation5], 10240
    $region33: #{generator_forward.1} parent=1 // pred_fallthru
      _
    // Predicated region
    $region34: #{generator_forward.1} parent=1 // pred_check
      _
    $region35: #{generator_forward.1} parent=1 // pred_check_branch
      %62 = sbr.rel (0) target = $region37
    $region36: #{generator_forward.1} parent=1 // pred_region
      %63 = dma.done [#allocation5], 4096
    $region37: #{generator_forward.1} parent=1 // pred_fallthru
      _
    %v64 = vld [vmem:[#allocation2] sm:$0xff]
    %v65 = vld [vmem:[#allocation4] sm:$0xff]
    %v66 = vld [vmem:[#allocation4 + $0x8] sm:$0xff]
    %v67 = vld [vmem:[#allocation4 + $0x10] sm:$0xff]
    %v68 = vld [vmem:[#allocation4 + $0x18] sm:$0xff]
    %v69 = vld [vmem:[#allocation4 + $0x20] sm:$0xff]
    %v70 = vld [vmem:[#allocation4 + $0x28] sm:$0xff]
    %v71 = vld [vmem:[#allocation4 + $0x30] sm:$0xff]
    %v72 = vld [vmem:[#allocation4 + $0x38] sm:$0xff]
    %v73 = vld [vmem:[#allocation4 + $0x40] sm:$0xff]
    %v74 = vld [vmem:[%s3] sm:$0x1]
    %v76 = vlaneseq
    %v77 = vshrl.u32 %v76, 7
    %v78 = vsub.s32 0, %v77
    %v79 = vrot.slane %v74, %v78
    %vm81 = vcmask 588800
    %v83 = vsel %vm81, %v64, 0
    %85 = vmatprep.subr.mxu0 0.0
    %86 = vmatpush1.msra.mxu0 0.0
    %87 = vmatprep.subr.mxu0 0.0
    %88 = vmatpush1.msra.mxu0 0.0
    %89 = vmatprep.subr.mxu0 0.0
    %90 = vmatpush1.msra.mxu0 0.0
    %91 = vmatprep.subr.mxu0 0.0
    %92 = vmatpush1.msra.mxu0 0.0
    %93 = vmatprep.subr.mxu0 0.0
    %94 = vmatpush1.msra.mxu0 0.0
    %95 = vmatprep.subr.mxu0 0.0
    %96 = vmatpush1.msra.mxu0 0.0
    %97 = vmatprep.subr.mxu0 0.0
    %98 = vmatpush1.msra.mxu0 0.0
    %99 = vmatprep.subr.mxu0 0.0
    %100 = vmatpush1.msra.mxu0 %v73
    %101 = vmatprep.subr.mxu0 0.0
    %102 = vmatpush1.msra.mxu0 %v72
    %103 = vmatprep.subr.mxu0 0.0
    %104 = vmatpush1.msra.mxu0 %v71
    %105 = vmatprep.subr.mxu0 0.0
    %106 = vmatpush1.msra.mxu0 %v70
    %107 = vmatprep.subr.mxu0 0.0
    %108 = vmatpush1.msra.mxu0 %v69
    %109 = vmatprep.subr.mxu0 0.0
    %110 = vmatpush1.msra.mxu0 %v68
    %111 = vmatprep.subr.mxu0 0.0
    %112 = vmatpush1.msra.mxu0 %v67
    %113 = vmatprep.subr.mxu0 0.0
    %114 = vmatpush1.msra.mxu0 %v66
    %115 = vmatprep.subr.mxu0 0.0
    %116 = vmatpush1.msra.mxu0 %v65
    %117 = vmatprep.subr.mxu0 0.0
    %118 = vmatpush2.msra.mxu0 0.0
    %119 = vmatprep.subr.mxu0 0.0
    %120 = vmatpush2.msra.mxu0 0.0
    %121 = vmatprep.subr.mxu0 0.0
    %122 = vmatpush2.msra.mxu0 0.0
    %123 = vmatprep.subr.mxu0 0.0
    %124 = vmatpush2.msra.mxu0 0.0
    %125 = vmatprep.subr.mxu0 0.0
    %126 = vmatpush2.msra.mxu0 0.0
    %127 = vmatprep.subr.mxu0 0.0
    %128 = vmatpush2.msra.mxu0 0.0
    %129 = vmatprep.subr.mxu0 0.0
    %130 = vmatpush2.msra.mxu0 0.0
    %131 = vmatprep.subr.mxu0 0.0
    %132 = vmatpush2.msra.mxu0 0.0
    %133 = vmatprep.subr.mxu0 0.0
    %134 = vmatpush2.msra.mxu0 0.0
    %135 = vmatprep.subr.mxu0 0.0
    %136 = vmatpush2.msra.mxu0 0.0
    %137 = vmatprep.subr.mxu0 0.0
    %138 = vmatpush2.msra.mxu0 0.0
    %139 = vmatprep.subr.mxu0 0.0
    %140 = vmatpush2.msra.mxu0 0.0
    %141 = vmatprep.subr.mxu0 0.0
    %142 = vmatpush2.msra.mxu0 0.0
    %143 = vmatprep.subr.mxu0 0.0
    %144 = vmatpush2.msra.mxu0 0.0
    %145 = vmatprep.subr.mxu0 0.0
    %146 = vmatpush2.msra.mxu0 0.0
    %147 = vmatprep.subr.mxu0 0.0
    %148 = vmatpush2.msra.mxu0 0.0
    %149 = vmatprep.mubr.f32.mxu0 0.0
    %150 = vmatmul.mubr.f32.gmra.mxu0 %v83
    %v151 = vpop.f32.mrf.mxu0
    %v152 = vadd.f32 %v79, %v151
    %v153 = vpop.f32.mrf.mxu0
    %154 = vdwg.mxu0
    %v155 = vmul.f32 %v152, 0.1
    %v156 = vmax.f32 %v152, %v155
    %s157 = scalar_lea.vmem [#allocation4], 128
    %v158 = vld [vmem:[%s157] sm:$0xff]
    %v159 = vld [vmem:[%s157 + $0x8] sm:$0xff]
    %v160 = vld [vmem:[%s157 + $0x10] sm:$0xff]
    %v161 = vld [vmem:[%s157 + $0x18] sm:$0xff]
    %v162 = vld [vmem:[%s157 + $0x20] sm:$0xff]
    %v163 = vld [vmem:[%s157 + $0x28] sm:$0xff]
    %v164 = vld [vmem:[%s157 + $0x30] sm:$0xff]
    %v165 = vld [vmem:[%s157 + $0x38] sm:$0xff]
    %v166 = vld [vmem:[%s157 + $0x40] sm:$0xff]
    %v167 = vld [vmem:[%s157 + $0x48] sm:$0xff]
    %v168 = vld [vmem:[%s157 + $0x50] sm:$0xff]
    %v169 = vld [vmem:[%s157 + $0x58] sm:$0xff]
    %v170 = vld [vmem:[%s157 + $0x60] sm:$0xff]
    %v171 = vld [vmem:[%s157 + $0x68] sm:$0xff]
    %v172 = vld [vmem:[%s157 + $0x70] sm:$0xff]
    %v173 = vld [vmem:[%s157 + $0x78] sm:$0xff]
    %s174 = scalar_lea.vmem %s3, 1
    %v175 = vld [vmem:[%s174] sm:$0x1]
    %v177 = vlaneseq
    %v178 = vshrl.u32 %v177, 7
    %v179 = vsub.s32 0, %v178
    %v180 = vrot.slane %v175, %v179
    %182 = vmatprep.subr.mxu0 0.0
    %183 = vmatpush1.msra.mxu0 %v173
    %184 = vmatprep.subr.mxu0 0.0
    %185 = vmatpush1.msra.mxu0 %v172
    %186 = vmatprep.subr.mxu0 0.0
    %187 = vmatpush1.msra.mxu0 %v171
    %188 = vmatprep.subr.mxu0 0.0
    %189 = vmatpush1.msra.mxu0 %v170
    %190 = vmatprep.subr.mxu0 0.0
    %191 = vmatpush1.msra.mxu0 %v169
    %192 = vmatprep.subr.mxu0 0.0
    %193 = vmatpush1.msra.mxu0 %v168
    %194 = vmatprep.subr.mxu0 0.0
    %195 = vmatpush1.msra.mxu0 %v167
    %196 = vmatprep.subr.mxu0 0.0
    %197 = vmatpush1.msra.mxu0 %v166
    %198 = vmatprep.subr.mxu0 0.0
    %199 = vmatpush1.msra.mxu0 %v165
    %200 = vmatprep.subr.mxu0 0.0
    %201 = vmatpush1.msra.mxu0 %v164
    %202 = vmatprep.subr.mxu0 0.0
    %203 = vmatpush1.msra.mxu0 %v163
    %204 = vmatprep.subr.mxu0 0.0
    %205 = vmatpush1.msra.mxu0 %v162
    %206 = vmatprep.subr.mxu0 0.0
    %207 = vmatpush1.msra.mxu0 %v161
    %208 = vmatprep.subr.mxu0 0.0
    %209 = vmatpush1.msra.mxu0 %v160
    %210 = vmatprep.subr.mxu0 0.0
    %211 = vmatpush1.msra.mxu0 %v159
    %212 = vmatprep.subr.mxu0 0.0
    %213 = vmatpush1.msra.mxu0 %v158
    %214 = vmatprep.subr.mxu0 0.0
    %215 = vmatpush2.msra.mxu0 0.0
    %216 = vmatprep.subr.mxu0 0.0
    %217 = vmatpush2.msra.mxu0 0.0
    %218 = vmatprep.subr.mxu0 0.0
    %219 = vmatpush2.msra.mxu0 0.0
    %220 = vmatprep.subr.mxu0 0.0
    %221 = vmatpush2.msra.mxu0 0.0
    %222 = vmatprep.subr.mxu0 0.0
    %223 = vmatpush2.msra.mxu0 0.0
    %224 = vmatprep.subr.mxu0 0.0
    %225 = vmatpush2.msra.mxu0 0.0
    %226 = vmatprep.subr.mxu0 0.0
    %227 = vmatpush2.msra.mxu0 0.0
    %228 = vmatprep.subr.mxu0 0.0
    %229 = vmatpush2.msra.mxu0 0.0
    %230 = vmatprep.subr.mxu0 0.0
    %231 = vmatpush2.msra.mxu0 0.0
    %232 = vmatprep.subr.mxu0 0.0
    %233 = vmatpush2.msra.mxu0 0.0
    %234 = vmatprep.subr.mxu0 0.0
    %235 = vmatpush2.msra.mxu0 0.0
    %236 = vmatprep.subr.mxu0 0.0
    %237 = vmatpush2.msra.mxu0 0.0
    %238 = vmatprep.subr.mxu0 0.0
    %239 = vmatpush2.msra.mxu0 0.0
    %240 = vmatprep.subr.mxu0 0.0
    %241 = vmatpush2.msra.mxu0 0.0
    %242 = vmatprep.subr.mxu0 0.0
    %243 = vmatpush2.msra.mxu0 0.0
    %244 = vmatprep.subr.mxu0 0.0
    %245 = vmatpush2.msra.mxu0 0.0
    %246 = vmatprep.mubr.f32.mxu0 0.0
    %247 = vmatmul.mubr.f32.gmra.mxu0 %v156
    %v248 = vpop.f32.mrf.mxu0
    %v249 = vadd.f32 %v180, %v248
    %v250 = vpop.f32.mrf.mxu0
    %251 = vdwg.mxu0
    %v252 = vmul.f32 %v249, 0.1
    %v253 = vmax.f32 %v249, %v252
    %v254 = vld [vmem:[#allocation6] sm:$0xff]
    %v255 = vld [vmem:[#allocation6 + $0x8] sm:$0xff]
    %v256 = vld [vmem:[#allocation6 + $0x10] sm:$0xff]
    %v257 = vld [vmem:[#allocation6 + $0x18] sm:$0xff]
    %v258 = vld [vmem:[#allocation6 + $0x20] sm:$0xff]
    %v259 = vld [vmem:[#allocation6 + $0x28] sm:$0xff]
    %v260 = vld [vmem:[#allocation6 + $0x30] sm:$0xff]
    %v261 = vld [vmem:[#allocation6 + $0x38] sm:$0xff]
    %v262 = vld [vmem:[#allocation6 + $0x40] sm:$0xff]
    %v263 = vld [vmem:[#allocation6 + $0x48] sm:$0xff]
    %v264 = vld [vmem:[#allocation6 + $0x50] sm:$0xff]
    %v265 = vld [vmem:[#allocation6 + $0x58] sm:$0xff]
    %v266 = vld [vmem:[#allocation6 + $0x60] sm:$0xff]
    %v267 = vld [vmem:[#allocation6 + $0x68] sm:$0xff]
    %v268 = vld [vmem:[#allocation6 + $0x70] sm:$0xff]
    %v269 = vld [vmem:[#allocation6 + $0x78] sm:$0xff]
    %v270 = vld [vmem:[#allocation6 + $0x80] sm:$0xff]
    %v271 = vld [vmem:[#allocation6 + $0x88] sm:$0xff]
    %v272 = vld [vmem:[#allocation6 + $0x90] sm:$0xff]
    %v273 = vld [vmem:[#allocation6 + $0x98] sm:$0xff]
    %v274 = vld [vmem:[#allocation6 + $0xa0] sm:$0xff]
    %v275 = vld [vmem:[#allocation6 + $0xa8] sm:$0xff]
    %v276 = vld [vmem:[#allocation6 + $0xb0] sm:$0xff]
    %v277 = vld [vmem:[#allocation6 + $0xb8] sm:$0xff]
    %v278 = vld [vmem:[#allocation6 + $0xc0] sm:$0xff]
    %v279 = vld [vmem:[#allocation6 + $0xc8] sm:$0xff]
    %v280 = vld [vmem:[#allocation6 + $0xd0] sm:$0xff]
    %v281 = vld [vmem:[#allocation6 + $0xd8] sm:$0xff]
    %v282 = vld [vmem:[#allocation6 + $0xe0] sm:$0xff]
    %v283 = vld [vmem:[#allocation6 + $0xe8] sm:$0xff]
    %v284 = vld [vmem:[#allocation6 + $0xf0] sm:$0xff]
    %v285 = vld [vmem:[#allocation6 + $0xf8] sm:$0xff]
    %v286 = vld [vmem:[%s5] sm:$0x3]
    %v288 = vlaneseq
    %v289 = vshrl.u32 %v288, 7
    %v290 = vsub.s32 0, %v289
    %v291 = vrot.slane %v286, %v290
    %v292 = vlaneseq
    %v293 = vshrl.u32 %v292, 7
    %v294 = vsub.s32 1, %v293
    %v295 = vrot.slane %v286, %v294
    %298 = vmatprep.subr.mxu0 %v285
    %299 = vmatpush1.msra.mxu0 %v284
    %300 = vmatprep.subr.mxu0 %v283
    %301 = vmatpush1.msra.mxu0 %v282
    %302 = vmatprep.subr.mxu0 %v281
    %303 = vmatpush1.msra.mxu0 %v280
    %304 = vmatprep.subr.mxu0 %v279
    %305 = vmatpush1.msra.mxu0 %v278
    %306 = vmatprep.subr.mxu0 %v277
    %307 = vmatpush1.msra.mxu0 %v276
    %308 = vmatprep.subr.mxu0 %v275
    %309 = vmatpush1.msra.mxu0 %v274
    %310 = vmatprep.subr.mxu0 %v273
    %311 = vmatpush1.msra.mxu0 %v272
    %312 = vmatprep.subr.mxu0 %v271
    %313 = vmatpush1.msra.mxu0 %v270
    %314 = vmatprep.subr.mxu0 %v269
    %315 = vmatpush1.msra.mxu0 %v268
    %316 = vmatprep.subr.mxu0 %v267
    %317 = vmatpush1.msra.mxu0 %v266
    %318 = vmatprep.subr.mxu0 %v265
    %319 = vmatpush1.msra.mxu0 %v264
    %320 = vmatprep.subr.mxu0 %v263
    %321 = vmatpush1.msra.mxu0 %v262
    %322 = vmatprep.subr.mxu0 %v261
    %323 = vmatpush1.msra.mxu0 %v260
    %324 = vmatprep.subr.mxu0 %v259
    %325 = vmatpush1.msra.mxu0 %v258
    %326 = vmatprep.subr.mxu0 %v257
    %327 = vmatpush1.msra.mxu0 %v256
    %328 = vmatprep.subr.mxu0 %v255
    %329 = vmatpush1.msra.mxu0 %v254
    %330 = vmatprep.subr.mxu0 0.0
    %331 = vmatpush2.msra.mxu0 0.0
    %332 = vmatprep.subr.mxu0 0.0
    %333 = vmatpush2.msra.mxu0 0.0
    %334 = vmatprep.subr.mxu0 0.0
    %335 = vmatpush2.msra.mxu0 0.0
    %336 = vmatprep.subr.mxu0 0.0
    %337 = vmatpush2.msra.mxu0 0.0
    %338 = vmatprep.subr.mxu0 0.0
    %339 = vmatpush2.msra.mxu0 0.0
    %340 = vmatprep.subr.mxu0 0.0
    %341 = vmatpush2.msra.mxu0 0.0
    %342 = vmatprep.subr.mxu0 0.0
    %343 = vmatpush2.msra.mxu0 0.0
    %344 = vmatprep.subr.mxu0 0.0
    %345 = vmatpush2.msra.mxu0 0.0
    %346 = vmatprep.subr.mxu0 0.0
    %347 = vmatpush2.msra.mxu0 0.0
    %348 = vmatprep.subr.mxu0 0.0
    %349 = vmatpush2.msra.mxu0 0.0
    %350 = vmatprep.subr.mxu0 0.0
    %351 = vmatpush2.msra.mxu0 0.0
    %352 = vmatprep.subr.mxu0 0.0
    %353 = vmatpush2.msra.mxu0 0.0
    %354 = vmatprep.subr.mxu0 0.0
    %355 = vmatpush2.msra.mxu0 0.0
    %356 = vmatprep.subr.mxu0 0.0
    %357 = vmatpush2.msra.mxu0 0.0
    %358 = vmatprep.subr.mxu0 0.0
    %359 = vmatpush2.msra.mxu0 0.0
    %360 = vmatprep.subr.mxu0 0.0
    %361 = vmatpush2.msra.mxu0 0.0
    %362 = vmatprep.mubr.f32.mxu0 0.0
    %363 = vmatmul.mubr.f32.gmra.mxu0 %v253
    %v364 = vpop.f32.mrf.mxu0
    %v365 = vadd.f32 %v291, %v364
    %v366 = vpop.f32.mrf.mxu0
    %v367 = vadd.f32 %v295, %v366
    %368 = vdwg.mxu0
    %v369 = vmul.f32 %v367, 1.442695
    %v370 = vpow.pop %v369
    %v371 = vld [vmem:[%s1] sm:$0xff]
    %v372 = vmul.f32 %v370, %v371
    %v373 = vadd.f32 %v365, %v372
    %s374 = scalar_lea.vmem [#allocation4], 256
    %v375 = vld [vmem:[%s374] sm:$0xff]
    %v376 = vld [vmem:[%s374 + $0x8] sm:$0xff]
    %v377 = vld [vmem:[%s374 + $0x10] sm:$0xff]
    %v378 = vld [vmem:[%s374 + $0x18] sm:$0xff]
    %v379 = vld [vmem:[%s374 + $0x20] sm:$0xff]
    %v380 = vld [vmem:[%s374 + $0x28] sm:$0xff]
    %v381 = vld [vmem:[%s374 + $0x30] sm:$0xff]
    %v382 = vld [vmem:[%s374 + $0x38] sm:$0xff]
    %v383 = vld [vmem:[%s374 + $0x40] sm:$0xff]
    %v384 = vld [vmem:[%s374 + $0x48] sm:$0xff]
    %v385 = vld [vmem:[%s374 + $0x50] sm:$0xff]
    %v386 = vld [vmem:[%s374 + $0x58] sm:$0xff]
    %v387 = vld [vmem:[%s374 + $0x60] sm:$0xff]
    %v388 = vld [vmem:[%s374 + $0x68] sm:$0xff]
    %v389 = vld [vmem:[%s374 + $0x70] sm:$0xff]
    %v390 = vld [vmem:[%s374 + $0x78] sm:$0xff]
    %s391 = scalar_lea.vmem %s3, 2
    %v392 = vld [vmem:[%s391] sm:$0x1]
    %v394 = vlaneseq
    %v395 = vshrl.u32 %v394, 7
    %v396 = vsub.s32 0, %v395
    %v397 = vrot.slane %v392, %v396
    %399 = vmatprep.subr.mxu0 0.0
    %400 = vmatpush1.msra.mxu0 %v390
    %401 = vmatprep.subr.mxu0 0.0
    %402 = vmatpush1.msra.mxu0 %v389
    %403 = vmatprep.subr.mxu0 0.0
    %404 = vmatpush1.msra.mxu0 %v388
    %405 = vmatprep.subr.mxu0 0.0
    %406 = vmatpush1.msra.mxu0 %v387
    %407 = vmatprep.subr.mxu0 0.0
    %408 = vmatpush1.msra.mxu0 %v386
    %409 = vmatprep.subr.mxu0 0.0
    %410 = vmatpush1.msra.mxu0 %v385
    %411 = vmatprep.subr.mxu0 0.0
    %412 = vmatpush1.msra.mxu0 %v384
    %413 = vmatprep.subr.mxu0 0.0
    %414 = vmatpush1.msra.mxu0 %v383
    %415 = vmatprep.subr.mxu0 0.0
    %416 = vmatpush1.msra.mxu0 %v382
    %417 = vmatprep.subr.mxu0 0.0
    %418 = vmatpush1.msra.mxu0 %v381
    %419 = vmatprep.subr.mxu0 0.0
    %420 = vmatpush1.msra.mxu0 %v380
    %421 = vmatprep.subr.mxu0 0.0
    %422 = vmatpush1.msra.mxu0 %v379
    %423 = vmatprep.subr.mxu0 0.0
    %424 = vmatpush1.msra.mxu0 %v378
    %425 = vmatprep.subr.mxu0 0.0
    %426 = vmatpush1.msra.mxu0 %v377
    %427 = vmatprep.subr.mxu0 0.0
    %428 = vmatpush1.msra.mxu0 %v376
    %429 = vmatprep.subr.mxu0 0.0
    %430 = vmatpush1.msra.mxu0 %v375
    %431 = vmatprep.subr.mxu0 0.0
    %432 = vmatpush2.msra.mxu0 0.0
    %433 = vmatprep.subr.mxu0 0.0
    %434 = vmatpush2.msra.mxu0 0.0
    %435 = vmatprep.subr.mxu0 0.0
    %436 = vmatpush2.msra.mxu0 0.0
    %437 = vmatprep.subr.mxu0 0.0
    %438 = vmatpush2.msra.mxu0 0.0
    %439 = vmatprep.subr.mxu0 0.0
    %440 = vmatpush2.msra.mxu0 0.0
    %441 = vmatprep.subr.mxu0 0.0
    %442 = vmatpush2.msra.mxu0 0.0
    %443 = vmatprep.subr.mxu0 0.0
    %444 = vmatpush2.msra.mxu0 0.0
    %445 = vmatprep.subr.mxu0 0.0
    %446 = vmatpush2.msra.mxu0 0.0
    %447 = vmatprep.subr.mxu0 0.0
    %448 = vmatpush2.msra.mxu0 0.0
    %449 = vmatprep.subr.mxu0 0.0
    %450 = vmatpush2.msra.mxu0 0.0
    %451 = vmatprep.subr.mxu0 0.0
    %452 = vmatpush2.msra.mxu0 0.0
    %453 = vmatprep.subr.mxu0 0.0
    %454 = vmatpush2.msra.mxu0 0.0
    %455 = vmatprep.subr.mxu0 0.0
    %456 = vmatpush2.msra.mxu0 0.0
    %457 = vmatprep.subr.mxu0 0.0
    %458 = vmatpush2.msra.mxu0 0.0
    %459 = vmatprep.subr.mxu0 0.0
    %460 = vmatpush2.msra.mxu0 0.0
    %461 = vmatprep.subr.mxu0 0.0
    %462 = vmatpush2.msra.mxu0 0.0
    %463 = vmatprep.mubr.f32.mxu0 0.0
    %464 = vmatmul.mubr.f32.gmra.mxu0 %v373
    %v465 = vpop.f32.mrf.mxu0
    %v466 = vadd.f32 %v397, %v465
    %v467 = vpop.f32.mrf.mxu0
    %468 = vdwg.mxu0
    %v469 = vmul.f32 %v466, 0.1
    %v470 = vmax.f32 %v466, %v469
    %s471 = scalar_lea.vmem [#allocation4], 384
    %v472 = vld [vmem:[%s471] sm:$0xff]
    %v473 = vld [vmem:[%s471 + $0x8] sm:$0xff]
    %v474 = vld [vmem:[%s471 + $0x10] sm:$0xff]
    %v475 = vld [vmem:[%s471 + $0x18] sm:$0xff]
    %v476 = vld [vmem:[%s471 + $0x20] sm:$0xff]
    %v477 = vld [vmem:[%s471 + $0x28] sm:$0xff]
    %v478 = vld [vmem:[%s471 + $0x30] sm:$0xff]
    %v479 = vld [vmem:[%s471 + $0x38] sm:$0xff]
    %v480 = vld [vmem:[%s471 + $0x40] sm:$0xff]
    %v481 = vld [vmem:[%s471 + $0x48] sm:$0xff]
    %v482 = vld [vmem:[%s471 + $0x50] sm:$0xff]
    %v483 = vld [vmem:[%s471 + $0x58] sm:$0xff]
    %v484 = vld [vmem:[%s471 + $0x60] sm:$0xff]
    %v485 = vld [vmem:[%s471 + $0x68] sm:$0xff]
    %v486 = vld [vmem:[%s471 + $0x70] sm:$0xff]
    %v487 = vld [vmem:[%s471 + $0x78] sm:$0xff]
    %s488 = scalar_lea.vmem %s3, 3
    %v489 = vld [vmem:[%s488] sm:$0x1]
    %v491 = vlaneseq
    %v492 = vshrl.u32 %v491, 7
    %v493 = vsub.s32 0, %v492
    %v494 = vrot.slane %v489, %v493
    %496 = vmatprep.subr.mxu0 0.0
    %497 = vmatpush1.msra.mxu0 %v487
    %498 = vmatprep.subr.mxu0 0.0
    %499 = vmatpush1.msra.mxu0 %v486
    %500 = vmatprep.subr.mxu0 0.0
    %501 = vmatpush1.msra.mxu0 %v485
    %502 = vmatprep.subr.mxu0 0.0
    %503 = vmatpush1.msra.mxu0 %v484
    %504 = vmatprep.subr.mxu0 0.0
    %505 = vmatpush1.msra.mxu0 %v483
    %506 = vmatprep.subr.mxu0 0.0
    %507 = vmatpush1.msra.mxu0 %v482
    %508 = vmatprep.subr.mxu0 0.0
    %509 = vmatpush1.msra.mxu0 %v481
    %510 = vmatprep.subr.mxu0 0.0
    %511 = vmatpush1.msra.mxu0 %v480
    %512 = vmatprep.subr.mxu0 0.0
    %513 = vmatpush1.msra.mxu0 %v479
    %514 = vmatprep.subr.mxu0 0.0
    %515 = vmatpush1.msra.mxu0 %v478
    %516 = vmatprep.subr.mxu0 0.0
    %517 = vmatpush1.msra.mxu0 %v477
    %518 = vmatprep.subr.mxu0 0.0
    %519 = vmatpush1.msra.mxu0 %v476
    %520 = vmatprep.subr.mxu0 0.0
    %521 = vmatpush1.msra.mxu0 %v475
    %522 = vmatprep.subr.mxu0 0.0
    %523 = vmatpush1.msra.mxu0 %v474
    %524 = vmatprep.subr.mxu0 0.0
    %525 = vmatpush1.msra.mxu0 %v473
    %526 = vmatprep.subr.mxu0 0.0
    %527 = vmatpush1.msra.mxu0 %v472
    %528 = vmatprep.subr.mxu0 0.0
    %529 = vmatpush2.msra.mxu0 0.0
    %530 = vmatprep.subr.mxu0 0.0
    %531 = vmatpush2.msra.mxu0 0.0
    %532 = vmatprep.subr.mxu0 0.0
    %533 = vmatpush2.msra.mxu0 0.0
    %534 = vmatprep.subr.mxu0 0.0
    %535 = vmatpush2.msra.mxu0 0.0
    %536 = vmatprep.subr.mxu0 0.0
    %537 = vmatpush2.msra.mxu0 0.0
    %538 = vmatprep.subr.mxu0 0.0
    %539 = vmatpush2.msra.mxu0 0.0
    %540 = vmatprep.subr.mxu0 0.0
    %541 = vmatpush2.msra.mxu0 0.0
    %542 = vmatprep.subr.mxu0 0.0
    %543 = vmatpush2.msra.mxu0 0.0
    %544 = vmatprep.subr.mxu0 0.0
    %545 = vmatpush2.msra.mxu0 0.0
    %546 = vmatprep.subr.mxu0 0.0
    %547 = vmatpush2.msra.mxu0 0.0
    %548 = vmatprep.subr.mxu0 0.0
    %549 = vmatpush2.msra.mxu0 0.0
    %550 = vmatprep.subr.mxu0 0.0
    %551 = vmatpush2.msra.mxu0 0.0
    %552 = vmatprep.subr.mxu0 0.0
    %553 = vmatpush2.msra.mxu0 0.0
    %554 = vmatprep.subr.mxu0 0.0
    %555 = vmatpush2.msra.mxu0 0.0
    %556 = vmatprep.subr.mxu0 0.0
    %557 = vmatpush2.msra.mxu0 0.0
    %558 = vmatprep.subr.mxu0 0.0
    %559 = vmatpush2.msra.mxu0 0.0
    %560 = vmatprep.mubr.f32.mxu0 0.0
    %561 = vmatmul.mubr.f32.gmra.mxu0 %v470
    %v562 = vpop.f32.mrf.mxu0
    %v563 = vadd.f32 %v494, %v562
    %v564 = vpop.f32.mrf.mxu0
    %565 = vdwg.mxu0
    %v566 = vmul.f32 %v563, 0.1
    %v567 = vmax.f32 %v563, %v566
    %s568 = scalar_lea.vmem [#allocation4], 512
    %v569 = vld [vmem:[%s568] sm:$0xff]
    %v570 = vld [vmem:[%s568 + $0x8] sm:$0xff]
    %v571 = vld [vmem:[%s568 + $0x10] sm:$0xff]
    %v572 = vld [vmem:[%s568 + $0x18] sm:$0xff]
    %v573 = vld [vmem:[%s568 + $0x20] sm:$0xff]
    %v574 = vld [vmem:[%s568 + $0x28] sm:$0xff]
    %v575 = vld [vmem:[%s568 + $0x30] sm:$0xff]
    %v576 = vld [vmem:[%s568 + $0x38] sm:$0xff]
    %v577 = vld [vmem:[%s568 + $0x40] sm:$0xff]
    %v578 = vld [vmem:[%s568 + $0x48] sm:$0xff]
    %v579 = vld [vmem:[%s568 + $0x50] sm:$0xff]
    %v580 = vld [vmem:[%s568 + $0x58] sm:$0xff]
    %v581 = vld [vmem:[%s568 + $0x60] sm:$0xff]
    %v582 = vld [vmem:[%s568 + $0x68] sm:$0xff]
    %v583 = vld [vmem:[%s568 + $0x70] sm:$0xff]
    %v584 = vld [vmem:[%s568 + $0x78] sm:$0xff]
    %s585 = scalar_lea.vmem %s3, 4
    %v586 = vld [vmem:[%s585] sm:$0x1]
    %v588 = vlaneseq
    %v589 = vshrl.u32 %v588, 7
    %v590 = vsub.s32 0, %v589
    %v591 = vrot.slane %v586, %v590
    %593 = vmatprep.subr.mxu0 0.0
    %594 = vmatpush1.msra.mxu0 %v584
    %595 = vmatprep.subr.mxu0 0.0
    %596 = vmatpush1.msra.mxu0 %v583
    %597 = vmatprep.subr.mxu0 0.0
    %598 = vmatpush1.msra.mxu0 %v582
    %599 = vmatprep.subr.mxu0 0.0
    %600 = vmatpush1.msra.mxu0 %v581
    %601 = vmatprep.subr.mxu0 0.0
    %602 = vmatpush1.msra.mxu0 %v580
    %603 = vmatprep.subr.mxu0 0.0
    %604 = vmatpush1.msra.mxu0 %v579
    %605 = vmatprep.subr.mxu0 0.0
    %606 = vmatpush1.msra.mxu0 %v578
    %607 = vmatprep.subr.mxu0 0.0
    %608 = vmatpush1.msra.mxu0 %v577
    %609 = vmatprep.subr.mxu0 0.0
    %610 = vmatpush1.msra.mxu0 %v576
    %611 = vmatprep.subr.mxu0 0.0
    %612 = vmatpush1.msra.mxu0 %v575
    %613 = vmatprep.subr.mxu0 0.0
    %614 = vmatpush1.msra.mxu0 %v574
    %615 = vmatprep.subr.mxu0 0.0
    %616 = vmatpush1.msra.mxu0 %v573
    %617 = vmatprep.subr.mxu0 0.0
    %618 = vmatpush1.msra.mxu0 %v572
    %619 = vmatprep.subr.mxu0 0.0
    %620 = vmatpush1.msra.mxu0 %v571
    %621 = vmatprep.subr.mxu0 0.0
    %622 = vmatpush1.msra.mxu0 %v570
    %623 = vmatprep.subr.mxu0 0.0
    %624 = vmatpush1.msra.mxu0 %v569
    %625 = vmatprep.subr.mxu0 0.0
    %626 = vmatpush2.msra.mxu0 0.0
    %627 = vmatprep.subr.mxu0 0.0
    %628 = vmatpush2.msra.mxu0 0.0
    %629 = vmatprep.subr.mxu0 0.0
    %630 = vmatpush2.msra.mxu0 0.0
    %631 = vmatprep.subr.mxu0 0.0
    %632 = vmatpush2.msra.mxu0 0.0
    %633 = vmatprep.subr.mxu0 0.0
    %634 = vmatpush2.msra.mxu0 0.0
    %635 = vmatprep.subr.mxu0 0.0
    %636 = vmatpush2.msra.mxu0 0.0
    %637 = vmatprep.subr.mxu0 0.0
    %638 = vmatpush2.msra.mxu0 0.0
    %639 = vmatprep.subr.mxu0 0.0
    %640 = vmatpush2.msra.mxu0 0.0
    %641 = vmatprep.subr.mxu0 0.0
    %642 = vmatpush2.msra.mxu0 0.0
    %643 = vmatprep.subr.mxu0 0.0
    %644 = vmatpush2.msra.mxu0 0.0
    %645 = vmatprep.subr.mxu0 0.0
    %646 = vmatpush2.msra.mxu0 0.0
    %647 = vmatprep.subr.mxu0 0.0
    %648 = vmatpush2.msra.mxu0 0.0
    %649 = vmatprep.subr.mxu0 0.0
    %650 = vmatpush2.msra.mxu0 0.0
    %651 = vmatprep.subr.mxu0 0.0
    %652 = vmatpush2.msra.mxu0 0.0
    %653 = vmatprep.subr.mxu0 0.0
    %654 = vmatpush2.msra.mxu0 0.0
    %655 = vmatprep.subr.mxu0 0.0
    %656 = vmatpush2.msra.mxu0 0.0
    %657 = vmatprep.mubr.f32.mxu0 0.0
    %658 = vmatmul.mubr.f32.gmra.mxu0 %v567
    %v659 = vpop.f32.mrf.mxu0
    %v660 = vadd.f32 %v591, %v659
    %v661 = vpop.f32.mrf.mxu0
    %662 = vdwg.mxu0
    %v663 = vmax.f32 %v660, 0.0
    %664 = vadd.xlane.f32.xlu0 %v663
    %v665 = vpop.xlane.xlu0 %664
    %v666 = vrcp.pop %v665
    %v667 = vmul.f32 %v665, %v666
    %v668 = vsub.f32 2.0, %v667
    %v669 = vmul.f32 %v666, %v668
    %v670 = vmul.f32 %v663, %v669
    %v672 = vcombine.high %v670, %v670
    %v674 = vunpack.c.l.s4 1983009808
    %v675 = vunpack.c.0.s8 %v674
    %v676 = vlaneseq
    %v677 = vshrl.u32 %v676, 7
    %v678 = vsub.s32 %v675, %v677
    %v679 = vrot.slane %v670, %v678
    %v681 = vunpack.c.l.s4 1983009808
    %v682 = vunpack.c.0.s8 %v681
    %v683 = vlaneseq
    %v684 = vshrl.u32 %v683, 7
    %v685 = vsub.s32 %v682, %v684
    %v686 = vrot.slane %v672, %v685
    %v687 = vcombine.high %v679, %v679
    %v688 = vcombine.high %v686, %v686
    %693 = vst [vmem:[#allocation7] sm:$0x3] %v679
    %694 = vst [vmem:[#allocation7 + $0x6] sm:$0x3] %v687
    %695 = vst [vmem:[#allocation7 + $0xc] sm:$0x3] %v686
    %696 = vst [vmem:[#allocation7 + $0x12] sm:$0x3] %v688
    %v698 = vcombine.high %v365, %v365
    %v700 = vunpack.c.l.s4 1983009808
    %v701 = vunpack.c.0.s8 %v700
    %v702 = vlaneseq
    %v703 = vshrl.u32 %v702, 7
    %v704 = vsub.s32 %v701, %v703
    %v705 = vrot.slane %v365, %v704
    %v707 = vunpack.c.l.s4 1983009808
    %v708 = vunpack.c.0.s8 %v707
    %v709 = vlaneseq
    %v710 = vshrl.u32 %v709, 7
    %v711 = vsub.s32 %v708, %v710
    %v712 = vrot.slane %v698, %v711
    %v713 = vcombine.high %v705, %v705
    %v714 = vcombine.high %v712, %v712
    %719 = vst [vmem:[#allocation7 + $0x2] sm:$0x3] %v705
    %720 = vst [vmem:[#allocation7 + $0x8] sm:$0x3] %v713
    %721 = vst [vmem:[#allocation7 + $0xe] sm:$0x3] %v712
    %722 = vst [vmem:[#allocation7 + $0x14] sm:$0x3] %v714
    %v724 = vcombine.high %v370, %v370
    %v726 = vunpack.c.l.s4 1983009808
    %v727 = vunpack.c.0.s8 %v726
    %v728 = vlaneseq
    %v729 = vshrl.u32 %v728, 7
    %v730 = vsub.s32 %v727, %v729
    %v731 = vrot.slane %v370, %v730
    %v733 = vunpack.c.l.s4 1983009808
    %v734 = vunpack.c.0.s8 %v733
    %v735 = vlaneseq
    %v736 = vshrl.u32 %v735, 7
    %v737 = vsub.s32 %v734, %v736
    %v738 = vrot.slane %v724, %v737
    %v739 = vcombine.high %v731, %v731
    %v740 = vcombine.high %v738, %v738
    %745 = vst [vmem:[#allocation7 + $0x4] sm:$0x3] %v731
    %746 = vst [vmem:[#allocation7 + $0xa] sm:$0x3] %v739
    %747 = vst [vmem:[#allocation7 + $0x10] sm:$0x3] %v738
    %748 = vst [vmem:[#allocation7 + $0x16] sm:$0x3] %v740
    // Predicated region
    $region38: #{generator_forward.1} parent=1 // pred_check
      _
    $region39: #{generator_forward.1} parent=1 // pred_check_branch
      %750 = sbr.rel (0) target = $region41
    $region40: #{generator_forward.1} parent=1 // pred_region
      // Predicated region
      $region42: #{generator_forward.1} parent=40 // pred_check
        _
      $region43: #{generator_forward.1} parent=40 // pred_check_branch
        %752 = sbr.rel (0) target = $region45
      $region44: #{generator_forward.1} parent=40 // pred_region
        // Predicated region
        $region46: #{generator_forward.1} parent=44 // pred_check
          _
        $region47: #{generator_forward.1} parent=44 // pred_check_branch
          %754 = sbr.rel target = $region49
        $region48: #{generator_forward.1} parent=44 // pred_region
          // Predicated region
          $region61: #{generator_forward.1} parent=48 // pred_check
            _
          $region62: #{generator_forward.1} parent=48 // pred_check_branch
            %770 = sbr.rel (0) target = $region64
          $region63: #{generator_forward.1} parent=48 // pred_region
            %s772 = ssub.s32 64, 1
            loop: start=0, step=1, limit=1
            $region65: #{generator_forward.1} parent=63 // loop_pre_header
              _
            $region66: #{generator_forward.1} parent=63 // loop_header
              %s774 = sphi 0, %s778
              %p775 = scmp.ge.s32.totalorder %s774, 1
              %s779 = sphi [#allocation7], [#allocation7]
              %s780 = sphi %s6, %s6
            $region67: #{generator_forward.1} parent=63 // loop_header_branch
              %777 = sbr.rel (%p775) target = $region71
            $region68: #{generator_forward.1} parent=63 // loop_body
              %v781 = vld [vmem:[%s779] sm:%s772]
              %782 = vst [vmem:[%s780] sm:%s772] %v781
            $region69: #{generator_forward.1} parent=63 // loop_footer
              %s778 = sadd.s32 1, %s774
            $region70: #{generator_forward.1} parent=63 // loop_footer_branch
              %773 = sbr.rel target = $region66
            $region71: #{generator_forward.1} parent=63 // loop_exit
              _
          $region64: #{generator_forward.1} parent=48 // pred_fallthru
            _
        $region49: #{generator_forward.1} parent=44 // pred_fallthru
          _
        // Predicated region
        $region50: #{generator_forward.1} parent=44 // pred_check
          _
        $region51: #{generator_forward.1} parent=44 // pred_check_branch
          %756 = sbr.rel (0) target = $region53
        $region52: #{generator_forward.1} parent=44 // pred_region
          %s758 = ssub.s32 64, 1
          loop: start=0, step=1, limit=1
          $region54: #{generator_forward.1} parent=52 // loop_pre_header
            _
          $region55: #{generator_forward.1} parent=52 // loop_header
            %s760 = sphi 0, %s764
            %p761 = scmp.ge.s32.totalorder %s760, 1
            %s765 = sphi [#allocation7], [#allocation7]
            %s766 = sphi %s6, %s6
          $region56: #{generator_forward.1} parent=52 // loop_header_branch
            %763 = sbr.rel (%p761) target = $region60
          $region57: #{generator_forward.1} parent=52 // loop_body
            %v767 = vld [vmem:[%s765] sm:%s758]
            %768 = vst [vmem:[%s766] sm:%s758] %v767
          $region58: #{generator_forward.1} parent=52 // loop_footer
            %s764 = sadd.s32 1, %s760
          $region59: #{generator_forward.1} parent=52 // loop_footer_branch
            %759 = sbr.rel target = $region55
          $region60: #{generator_forward.1} parent=52 // loop_exit
            _
        $region53: #{generator_forward.1} parent=44 // pred_fallthru
          _
      $region45: #{generator_forward.1} parent=40 // pred_fallthru
        _
      %783 = vnop
    $region41: #{generator_forward.1} parent=1 // pred_fallthru
      _
    // Predicated region
    $region72: #{generator_forward.1} parent=1 // pred_check
      _
    $region73: #{generator_forward.1} parent=1 // pred_check_branch
      %785 = sbr.rel (0) target = $region75
    $region74: #{generator_forward.1} parent=1 // pred_region
      _
    $region75: #{generator_forward.1} parent=1 // pred_fallthru
      _
    %786 = vsyncpa [#allocation3], 1
    %787 = vsyncpa [#allocation5], 1

</llo_original>
